<compile_context>
chip_gen: v5e
topology: v5e:2x2
jax: 0.10.0
libtpu: 0.0.40
codegen_flags: <defaults>
</compile_context>

<pallas_src>
import jax
import jax.numpy as jnp
from jax.experimental import pallas as pl
from jax.experimental.pallas import tpu as pltpu

EXPAND_ROWS = 3   # target batch size of the "expand" step
FEATURES = 2      # in/out features of both Linear(2, 2) layers


def _model_kernel(packed_ref, o_ref):
    # packed_ref: (4, 2) f32 slab
    #   row 0: x                 (the single input row)
    #   row 1: W_fold[0, :]      W_fold = W1^T @ W2^T, (in, out) layout
    #   row 2: W_fold[1, :]
    #   row 3: b_fold            b_fold = b1 @ W2^T + b2
    # o_ref: (3, 2)
    p = packed_ref[...]
    x = p[0:1, :]       # (1, 2)
    w_r0 = p[1:2, :]    # (1, 2)
    w_r1 = p[2:3, :]    # (1, 2)
    b = p[3:4, :]       # (1, 2)

    # Folded Linear∘Linear, K=2 unrolled as VPU FMAs (no MXU for a 2x2).
    h = x[:, 0:1] * w_r0 + x[:, 1:2] * w_r1 + b           # (1, 2)

    # "expand": replicate the single activation row to 3 output rows.
    o_ref[...] = jnp.broadcast_to(h, o_ref.shape).astype(o_ref.dtype)


def fold_params(w1, b1, w2, b2):
    """Fold Linear(2,2) -> Linear(2,2) into one affine map.

    Inputs are torch-layout: weight is (out, in), bias is (out,).
    Returns a (3, 2) f32 block: rows 0-1 = W_fold (in, out), row 2 = b_fold.
    Call this ONCE per model instance (hoisted out of the per-call path).
    """
    w1_t = jnp.asarray(w1, jnp.float32).T                  # (in, out)
    w2_t = jnp.asarray(w2, jnp.float32).T                  # (in, out)
    w_fold = w1_t @ w2_t                                   # (2, 2)
    b_fold = jnp.asarray(b1, jnp.float32) @ w2_t + jnp.asarray(b2, jnp.float32)
    return jnp.concatenate([w_fold, b_fold.reshape(1, -1)], axis=0)  # (3, 2)


@jax.jit
def model_forward(x, folded_params):
    """x: (1, 2) f32; folded_params: (3, 2) from fold_params()."""
    # One small packed slab -> one DMA / one padded VMEM tile.
    packed = jnp.concatenate(
        [jnp.asarray(x, jnp.float32).reshape(1, FEATURES), folded_params],
        axis=0,
    )  # (4, 2)

    return pl.pallas_call(
        _model_kernel,
        out_shape=jax.ShapeDtypeStruct((EXPAND_ROWS, FEATURES), jnp.float32),
        in_specs=[pl.BlockSpec(memory_space=pltpu.VMEM)],
        out_specs=pl.BlockSpec(memory_space=pltpu.VMEM),
    )(packed)


def _reference(x, w1, b1, w2, b2):
    h = x @ w1.T + b1
    h = jnp.broadcast_to(h, (EXPAND_ROWS, h.shape[1]))
    return h @ w2.T + b2


if __name__ == "__main__":
    key = jax.random.PRNGKey(0)
    k_x, k_w1, k_b1, k_w2, k_b2 = jax.random.split(key, 5)

    # Input: (1, 2) so the expand-to-3-rows is well defined.
    x = jax.random.normal(k_x, (1, FEATURES), jnp.float32)

    # Deterministic Linear(2, 2) params (torch layout: weight is (out, in)),
    # uniform(-1/sqrt(in), 1/sqrt(in)) like nn.Linear's default init.
    bound = 1.0 / (2.0 ** 0.5)
    w1 = jax.random.uniform(k_w1, (2, 2), jnp.float32, -bound, bound)
    b1 = jax.random.uniform(k_b1, (2,), jnp.float32, -bound, bound)
    w2 = jax.random.uniform(k_w2, (2, 2), jnp.float32, -bound, bound)
    b2 = jax.random.uniform(k_b2, (2,), jnp.float32, -bound, bound)

    # Fold / pre-transpose once (not per call).
    folded = jax.block_until_ready(fold_params(w1, b1, w2, b2))

    out = model_forward(x, folded)
    out = jax.block_until_ready(out)

    ref = _reference(x, w1, b1, w2, b2)
    assert out.shape == (EXPAND_ROWS, FEATURES), out.shape
    assert jnp.allclose(out, ref, atol=1e-5, rtol=1e-5), (out, ref)

    print("KERNEL_OK")
</pallas_src>

<mosaic_0001>
module attributes {stable_mosaic.version = 11 : i64} {
  func.func @_model_kernel(%arg0: memref<4x2xf32, #tpu.memory_space<vmem>>, %arg1: memref<3x2xf32, #tpu.memory_space<vmem>>) attributes {dimension_semantics = [], scalar_prefetch = 0 : i64, scratch_operands = 0 : i64, tpu.core_type = #tpu.core_type<tc>} {
    %c0 = arith.constant 0 : index
    %c0_0 = arith.constant 0 : index
    %0 = vector.load %arg0[%c0, %c0_0] : memref<4x2xf32, #tpu.memory_space<vmem>>, vector<4x2xf32>
    %1 = vector.extract_strided_slice %0 {offsets = [0, 0], sizes = [1, 2], strides = [1, 1]} : vector<4x2xf32> to vector<1x2xf32>
    %2 = vector.extract_strided_slice %0 {offsets = [1, 0], sizes = [1, 2], strides = [1, 1]} : vector<4x2xf32> to vector<1x2xf32>
    %3 = vector.extract_strided_slice %0 {offsets = [2, 0], sizes = [1, 2], strides = [1, 1]} : vector<4x2xf32> to vector<1x2xf32>
    %4 = vector.extract_strided_slice %0 {offsets = [3, 0], sizes = [1, 2], strides = [1, 1]} : vector<4x2xf32> to vector<1x2xf32>
    %5 = vector.extract_strided_slice %1 {offsets = [0, 0], sizes = [1, 1], strides = [1, 1]} : vector<1x2xf32> to vector<1x1xf32>
    %6 = vector.broadcast %5 : vector<1x1xf32> to vector<1x2xf32>
    %7 = arith.mulf %6, %2 : vector<1x2xf32>
    %8 = vector.extract_strided_slice %1 {offsets = [0, 1], sizes = [1, 1], strides = [1, 1]} : vector<1x2xf32> to vector<1x1xf32>
    %9 = vector.broadcast %8 : vector<1x1xf32> to vector<1x2xf32>
    %10 = arith.mulf %9, %3 : vector<1x2xf32>
    %11 = arith.addf %7, %10 : vector<1x2xf32>
    %12 = arith.addf %11, %4 : vector<1x2xf32>
    %13 = vector.shape_cast %12 : vector<1x2xf32> to vector<1x2xf32>
    %14 = vector.broadcast %13 : vector<1x2xf32> to vector<3x2xf32>
    %c0_1 = arith.constant 0 : index
    %c0_2 = arith.constant 0 : index
    %15 = vector.load %arg1[%c0_1, %c0_2] : memref<3x2xf32, #tpu.memory_space<vmem>>, vector<3x2xf32>
    tpu.vector_store %arg1[%c0_1, %c0_2], %14 {strides = array<i32>} : memref<3x2xf32, #tpu.memory_space<vmem>>, vector<3x2xf32>,
    return
  }
}

</mosaic_0001>

<llo_original>
// kernel: model_forward.1
$region0: #{model_forward.1}
  #allocation0 [shape = 'u32[]', space=smem, size = 0x4, offset = 0x4, fixed_abs, tag = 'smem constant byte address 0x4 - core index']
  #allocation1 [shape = 'u32[72,128]{1,0:T(1,128)}', space=vmem, size = 0x9000, scoped, tag = 'internal scratch']
  %s0 = inlined_call_operand.vmem [shape: f32[4,2], index: 0, kind: input, shape index: {}]
  %s1 = inlined_call_operand.vmem [shape: f32[3,2], index: 1, kind: output, shape index: {}]
  %s2 = sld [smem:[#allocation0]]
  $region14: #{model_forward.1} parent=0
    _
  %s4 = ssub.s32 1, %s2
  %s5 = scalar_select 0, %s4, %s2
  // Predicated region
  $region2: #{model_forward.1} parent=0 // pred_check
    _
  $region3: #{model_forward.1} parent=0 // pred_check_branch
    %7 = sbr.rel (0) target = $region5
  $region4: #{model_forward.1} parent=0 // pred_region
    _
  $region5: #{model_forward.1} parent=0 // pred_fallthru
    _
  %v8 = vld [vmem:[%s0] sm:$0xf]
  %10 = vset.pattern.permute.xlu0 0
  %11 = vperm.xlu0 %10, %v8
  %v12 = vpop.permute.xlu0 %11
  %v14 = vrot.slane %v8, 1
  %v16 = vmul.f32 %v12, %v14
  %17 = vset.pattern.permute.xlu0 1
  %18 = vperm.xlu0 %17, %v8
  %v19 = vpop.permute.xlu0 %18
  %v21 = vrot.slane %v8, 2
  %v23 = vmul.f32 %v19, %v21
  %v24 = vadd.f32 %v16, %v23
  %v25 = vrot.slane %v8, 3
  %v27 = vadd.f32 %v24, %v25
  %v28 = vperm.slane %v27, 0
  %vm29 = vcmask 10240
  %30 = vst.msk [vmem:[%s1] sm:$0x7] %vm29, %v28
  // Predicated region
  $region6: #{model_forward.1} parent=0 // pred_check
    _
  $region7: #{model_forward.1} parent=0 // pred_check_branch
    %32 = sbr.rel (0) target = $region9
  $region8: #{model_forward.1} parent=0 // pred_region
    _
  $region9: #{model_forward.1} parent=0 // pred_fallthru
    _
  // Predicated region
  $region10: #{model_forward.1} parent=0 // pred_check
    _
  $region11: #{model_forward.1} parent=0 // pred_check_branch
    %34 = sbr.rel (0) target = $region13
  $region12: #{model_forward.1} parent=0 // pred_region
    _
  $region13: #{model_forward.1} parent=0 // pred_fallthru
    _

</llo_original>
